<compile_context>
chip_gen: v7x
topology: tpu7x:2x2x1
jax: 0.10.0
libtpu: 0.0.40
codegen_flags: <defaults>
</compile_context>

<pallas_src>
import functools
import math

import jax
import jax.numpy as jnp
from jax import lax
from jax.experimental import pallas as pl
from jax.experimental.pallas import tpu as pltpu

_EPS = 1e-8  # torch.nn.functional.cosine_similarity default eps


def _round_up(x, m):
    return ((x + m - 1) // m) * m


def _vmem_budget_bytes():
    """~75% of physical VMEM: ~96 MiB on v5e/v6e (128 MiB), ~48 MiB on v7x (64 MiB)."""
    cap = None
    try:
        info = pltpu.get_tpu_info()
        cap = getattr(info, "vmem_capacity_bytes", None)
    except Exception:
        cap = None
    if not cap:
        cap = 64 << 20  # conservative fallback = v7x physical VMEM
    return int(cap) * 3 // 4


def _fmri_partials_kernel(pred_ref, actual_ref, out_ref, *,
                          tile_s, tiles_per_core, s_valid, masked):
    c = pl.program_id(0)  # "parallel" core-split axis
    k = pl.program_id(1)  # "arbitrary" streaming/reduction axis

    @pl.when(k == 0)
    def _():
        out_ref[...] = jnp.zeros_like(out_ref)

    # Cast this tile on-chip; inputs arrive in their native dtype.
    p = pred_ref[...].astype(jnp.float32)   # (B, tile_s, 128)
    a = actual_ref[...].astype(jnp.float32)

    if masked:
        # Zero rows beyond the true feature extent (partial / over-covered tiles use
        # the *unclamped* global tile index, so fully-OOB duplicate tiles mask to 0).
        t = c * tiles_per_core + k
        row = lax.broadcasted_iota(jnp.int32, (1, tile_s, 128), 1) + t * tile_s
        valid = row < s_valid
        p = jnp.where(valid, p, 0.0)
        a = jnp.where(valid, a, 0.0)

    b = p.shape[0]
    groups = tile_s // 8

    def _tree(x):
        # (B, tile_s, 128) -> (B, 8, 128): sublane-aligned partial sums, pure VALU
        # (no XLU); the single cross-lane reduce happens in the JAX wrapper.
        return jnp.sum(x.reshape(b, groups, 8, 128), axis=1)

    # One small (B, 8, 128) accumulate per quantity per tile (output block is the
    # VMEM-resident accumulator across the "arbitrary" axis).
    out_ref[0, 0] += _tree(jnp.abs(p - a))
    out_ref[0, 1] += _tree(p * a)
    out_ref[0, 2] += _tree(p * p)
    out_ref[0, 3] += _tree(a * a)


def fmri_loss(pred, actual, *, num_cores=2, target_block_bytes=4 << 20):
    """pred/actual: arrays with a leading batch dim (e.g. NCHW or (B, voxels))."""
    assert pred.shape == actual.shape
    b = pred.shape[0]
    f = math.prod(pred.shape[1:])
    itemsize = jnp.dtype(pred.dtype).itemsize

    p2 = pred.reshape(b, f)
    a2 = actual.reshape(b, f)

    # Pad only to the next multiple of 128 (lane alignment). Tile-level raggedness is
    # handled in-kernel with a sublane mask instead of a big HBM pad copy.
    f128 = _round_up(f, 128)
    if f128 != f:
        p2 = jnp.pad(p2, ((0, 0), (0, f128 - f)))
        a2 = jnp.pad(a2, ((0, 0), (0, f128 - f)))
    s = f128 // 128

    # Feature-row layout (B, S, 128): every vreg is full even for tiny batch sizes.
    p3 = p2.reshape(b, s, 128)
    a3 = a2.reshape(b, s, 128)

    # --- tile sizing from the VMEM budget (B- and dtype-aware) ---
    budget = _vmem_budget_bytes()
    bytes_per_row = b * 128 * itemsize
    sub = max(8, 32 // itemsize)  # sublane multiple (8 for f32, 16 for bf16, ...)
    # 2 inputs x 2 pipeline buffers must fit; leave ~1 MiB slack for outputs/internal.
    max_block_bytes = max(bytes_per_row * sub, (budget - (1 << 20)) // 4)
    block_bytes = min(int(target_block_bytes), max_block_bytes)
    tile_s = max(sub, (block_bytes // bytes_per_row) // sub * sub)
    tile_s = min(tile_s, _round_up(s, sub))

    n_tiles = -(-s // tile_s)
    num_cores_eff = max(1, min(num_cores, n_tiles))
    tiles_per_core = -(-n_tiles // num_cores_eff)
    covered = num_cores_eff * tiles_per_core * tile_s
    masked = covered != s  # static: mask only compiled in when needed

    def in_map(c, k):
        t = c * tiles_per_core + k
        return (0, jnp.minimum(t, n_tiles - 1), 0)

    kernel = functools.partial(
        _fmri_partials_kernel,
        tile_s=tile_s, tiles_per_core=tiles_per_core, s_valid=s, masked=masked)

    cost = pl.CostEstimate(
        flops=10 * b * f128,
        transcendentals=0,
        bytes_accessed=2 * b * f128 * itemsize + num_cores_eff * 4 * b * 8 * 128 * 4)

    partials = pl.pallas_call(
        kernel,
        out_shape=jax.ShapeDtypeStruct((num_cores_eff, 4, b, 8, 128), jnp.float32),
        grid_spec=pltpu.PrefetchScalarGridSpec(
            num_scalar_prefetch=0,
            grid=(num_cores_eff, tiles_per_core),
            in_specs=[
                pl.BlockSpec((b, tile_s, 128), in_map),
                pl.BlockSpec((b, tile_s, 128), in_map),
            ],
            out_specs=pl.BlockSpec((1, 4, b, 8, 128), lambda c, k: (c, 0, 0, 0, 0)),
        ),
        compiler_params=pltpu.CompilerParams(
            dimension_semantics=("parallel", "arbitrary"),
            vmem_limit_bytes=budget,
        ),
        cost_estimate=cost,
    )(p3, a3)

    # Finalize in JAX: combines per-core partials (v7x 2-TC split) and keeps the
    # kernel a pure streaming reduction (no XLU/EUP tail).
    sums = jnp.sum(partials, axis=(0, 3, 4))      # (4, B)
    l1 = jnp.sum(sums[0]) / float(b * f)          # nn.L1Loss(): mean over true elements
    dot, pp, aa = sums[1], sums[2], sums[3]
    denom = jnp.maximum(jnp.sqrt(pp) * jnp.sqrt(aa), _EPS)
    cos_loss = jnp.mean((1.0 - dot / denom) * 0.5)
    return 1.0 * l1 + 0.1 * cos_loss


def _fmri_loss_ref(pred, actual):
    b = pred.shape[0]
    p = pred.reshape(b, -1).astype(jnp.float32)
    a = actual.reshape(b, -1).astype(jnp.float32)
    l1 = jnp.mean(jnp.abs(p - a))
    dot = jnp.sum(p * a, axis=1)
    denom = jnp.maximum(jnp.linalg.norm(p, axis=1) * jnp.linalg.norm(a, axis=1), _EPS)
    cos_loss = jnp.mean((1.0 - dot / denom) * 0.5)
    return 1.0 * l1 + 0.1 * cos_loss


if __name__ == "__main__":
    key = jax.random.PRNGKey(0)
    k1, k2, k3, k4, k5, k6 = jax.random.split(key, 6)

    # Case 1: NCHW fMRI-decoder-style tensors (batch=2, channels=4, 16x16) -> F=1024.
    pred = jax.random.normal(k1, (2, 4, 16, 16), dtype=jnp.float32)
    actual = jax.random.normal(k2, (2, 4, 16, 16), dtype=jnp.float32)
    loss = fmri_loss(pred, actual)
    jax.block_until_ready(loss)
    ref = _fmri_loss_ref(pred, actual)
    assert jnp.allclose(loss, ref, atol=1e-5, rtol=1e-5), (loss, ref)

    # Case 2: force tiny blocks -> exercises multi-tile streaming + 2-way core split.
    pred2 = jax.random.normal(k3, (2, 4, 32, 32), dtype=jnp.float32)
    actual2 = jax.random.normal(k4, (2, 4, 32, 32), dtype=jnp.float32)
    loss2 = fmri_loss(pred2, actual2, target_block_bytes=8 * 2 * 128 * 4)
    jax.block_until_ready(loss2)
    ref2 = _fmri_loss_ref(pred2, actual2)
    assert jnp.allclose(loss2, ref2, atol=1e-5, rtol=1e-5), (loss2, ref2)

    # Case 3: bf16 inputs stay bf16 in HBM (half the DMA bytes), cast on-chip.
    pred_bf = pred2.astype(jnp.bfloat16)
    actual_bf = actual2.astype(jnp.bfloat16)
    loss3 = fmri_loss(pred_bf, actual_bf)
    jax.block_until_ready(loss3)
    ref3 = _fmri_loss_ref(pred_bf, actual_bf)
    assert jnp.allclose(loss3, ref3, atol=1e-4, rtol=1e-4), (loss3, ref3)

    # Case 4: unaligned voxel count -> <=127-element lane pad + in-kernel tail mask.
    predu = jax.random.normal(k5, (2, 2579), dtype=jnp.float32)
    actualu = jax.random.normal(k6, (2, 2579), dtype=jnp.float32)
    loss4 = fmri_loss(predu, actualu)
    jax.block_until_ready(loss4)
    ref4 = _fmri_loss_ref(predu, actualu)
    assert jnp.allclose(loss4, ref4, atol=1e-5, rtol=1e-5), (loss4, ref4)

    # Case 5: unaligned + tiny blocks -> clamped over-coverage tiles fully masked out.
    loss5 = fmri_loss(predu, actualu, target_block_bytes=8 * 2 * 128 * 4)
    jax.block_until_ready(loss5)
    assert jnp.allclose(loss5, ref4, atol=1e-5, rtol=1e-5), (loss5, ref4)

    print("KERNEL_OK")
</pallas_src>

<mosaic_0001>
module attributes {stable_mosaic.version = 11 : i64} {
  func.func @_fmri_partials_kernel(%arg0: i32, %arg1: i32, %arg2: memref<2x8x128xf32, #tpu.memory_space<vmem>>, %arg3: memref<2x8x128xf32, #tpu.memory_space<vmem>>, %arg4: memref<1x4x2x8x128xf32, #tpu.memory_space<vmem>>) attributes {dimension_semantics = [#tpu.dimension_semantics<parallel>, #tpu.dimension_semantics<arbitrary>], iteration_bounds = array<i64: 1, 1>, scalar_prefetch = 0 : i64, scratch_operands = 0 : i64, tpu.core_type = #tpu.core_type<tc>, window_params = [{transform_indices = @transform_0, window_bounds = array<i64: 2, 8, 128>}, {transform_indices = @transform_1, window_bounds = array<i64: 2, 8, 128>}, {transform_indices = @transform_2, window_bounds = array<i64: 1, 4, 2, 8, 128>}]} {
    %c0_i32 = arith.constant 0 : i32
    %0 = arith.cmpi eq, %arg1, %c0_i32 : i32
    %1 = arith.extui %0 : i1 to i32
    %c0_i32_0 = arith.constant 0 : i32
    %2 = arith.cmpi ne, %1, %c0_i32_0 : i32
    scf.if %2 {
      %cst_46 = arith.constant 0.000000e+00 : f32
      %42 = vector.broadcast %cst_46 : f32 to vector<1x4x2x8x128xf32>
      %c0_47 = arith.constant 0 : index
      %c0_48 = arith.constant 0 : index
      %c0_49 = arith.constant 0 : index
      %c0_50 = arith.constant 0 : index
      %c0_51 = arith.constant 0 : index
      %43 = vector.load %arg4[%c0_47, %c0_48, %c0_49, %c0_50, %c0_51] : memref<1x4x2x8x128xf32, #tpu.memory_space<vmem>>, vector<1x4x2x8x128xf32>
      tpu.vector_store %arg4[%c0_47, %c0_48, %c0_49, %c0_50, %c0_51], %42 {strides = array<i32>} : memref<1x4x2x8x128xf32, #tpu.memory_space<vmem>>, vector<1x4x2x8x128xf32>,
    } else {
    }
    %c0 = arith.constant 0 : index
    %c0_1 = arith.constant 0 : index
    %c0_2 = arith.constant 0 : index
    %3 = vector.load %arg2[%c0, %c0_1, %c0_2] : memref<2x8x128xf32, #tpu.memory_space<vmem>>, vector<2x8x128xf32>
    %c0_3 = arith.constant 0 : index
    %c0_4 = arith.constant 0 : index
    %c0_5 = arith.constant 0 : index
    %4 = vector.load %arg3[%c0_3, %c0_4, %c0_5] : memref<2x8x128xf32, #tpu.memory_space<vmem>>, vector<2x8x128xf32>
    %c0_6 = arith.constant 0 : index
    %c0_7 = arith.constant 0 : index
    %c0_8 = arith.constant 0 : index
    %c0_9 = arith.constant 0 : index
    %c0_10 = arith.constant 0 : index
    %5 = vector.load %arg4[%c0_6, %c0_7, %c0_8, %c0_9, %c0_10] : memref<1x4x2x8x128xf32, #tpu.memory_space<vmem>>, vector<1x1x2x8x128xf32>
    %6 = vector.shape_cast %5 : vector<1x1x2x8x128xf32> to vector<2x8x128xf32>
    %7 = arith.subf %3, %4 : vector<2x8x128xf32>
    %8 = math.absf %7 : vector<2x8x128xf32>
    %9 = vector.shape_cast %8 : vector<2x8x128xf32> to vector<2x1x8x128xf32>
    %cst = arith.constant dense<0.000000e+00> : vector<2x8x128xf32>
    %10 = vector.multi_reduction <add>, %9, %cst [1] : vector<2x1x8x128xf32> to vector<2x8x128xf32>
    %11 = arith.addf %6, %10 : vector<2x8x128xf32>
    %c0_11 = arith.constant 0 : index
    %c0_12 = arith.constant 0 : index
    %c0_13 = arith.constant 0 : index
    %c0_14 = arith.constant 0 : index
    %c0_15 = arith.constant 0 : index
    %12 = vector.load %arg4[%c0_11, %c0_12, %c0_13, %c0_14, %c0_15] : memref<1x4x2x8x128xf32, #tpu.memory_space<vmem>>, vector<1x1x2x8x128xf32>
    %13 = vector.shape_cast %12 : vector<1x1x2x8x128xf32> to vector<2x8x128xf32>
    %14 = vector.shape_cast %11 : vector<2x8x128xf32> to vector<1x1x2x8x128xf32>
    tpu.vector_store %arg4[%c0_11, %c0_12, %c0_13, %c0_14, %c0_15], %14 {strides = array<i32>} : memref<1x4x2x8x128xf32, #tpu.memory_space<vmem>>, vector<1x1x2x8x128xf32>,
    %c0_16 = arith.constant 0 : index
    %c1 = arith.constant 1 : index
    %c0_17 = arith.constant 0 : index
    %c0_18 = arith.constant 0 : index
    %c0_19 = arith.constant 0 : index
    %15 = vector.load %arg4[%c0_16, %c1, %c0_17, %c0_18, %c0_19] : memref<1x4x2x8x128xf32, #tpu.memory_space<vmem>>, vector<1x1x2x8x128xf32>
    %16 = vector.shape_cast %15 : vector<1x1x2x8x128xf32> to vector<2x8x128xf32>
    %17 = arith.mulf %3, %4 : vector<2x8x128xf32>
    %18 = vector.shape_cast %17 : vector<2x8x128xf32> to vector<2x1x8x128xf32>
    %cst_20 = arith.constant dense<0.000000e+00> : vector<2x8x128xf32>
    %19 = vector.multi_reduction <add>, %18, %cst_20 [1] : vector<2x1x8x128xf32> to vector<2x8x128xf32>
    %20 = arith.addf %16, %19 : vector<2x8x128xf32>
    %c0_21 = arith.constant 0 : index
    %c1_22 = arith.constant 1 : index
    %c0_23 = arith.constant 0 : index
    %c0_24 = arith.constant 0 : index
    %c0_25 = arith.constant 0 : index
    %21 = vector.load %arg4[%c0_21, %c1_22, %c0_23, %c0_24, %c0_25] : memref<1x4x2x8x128xf32, #tpu.memory_space<vmem>>, vector<1x1x2x8x128xf32>
    %22 = vector.shape_cast %21 : vector<1x1x2x8x128xf32> to vector<2x8x128xf32>
    %23 = vector.shape_cast %20 : vector<2x8x128xf32> to vector<1x1x2x8x128xf32>
    tpu.vector_store %arg4[%c0_21, %c1_22, %c0_23, %c0_24, %c0_25], %23 {strides = array<i32>} : memref<1x4x2x8x128xf32, #tpu.memory_space<vmem>>, vector<1x1x2x8x128xf32>,
    %c0_26 = arith.constant 0 : index
    %c2 = arith.constant 2 : index
    %c0_27 = arith.constant 0 : index
    %c0_28 = arith.constant 0 : index
    %c0_29 = arith.constant 0 : index
    %24 = vector.load %arg4[%c0_26, %c2, %c0_27, %c0_28, %c0_29] : memref<1x4x2x8x128xf32, #tpu.memory_space<vmem>>, vector<1x1x2x8x128xf32>
    %25 = vector.shape_cast %24 : vector<1x1x2x8x128xf32> to vector<2x8x128xf32>
    %26 = arith.mulf %3, %3 : vector<2x8x128xf32>
    %27 = vector.shape_cast %26 : vector<2x8x128xf32> to vector<2x1x8x128xf32>
    %cst_30 = arith.constant dense<0.000000e+00> : vector<2x8x128xf32>
    %28 = vector.multi_reduction <add>, %27, %cst_30 [1] : vector<2x1x8x128xf32> to vector<2x8x128xf32>
    %29 = arith.addf %25, %28 : vector<2x8x128xf32>
    %c0_31 = arith.constant 0 : index
    %c2_32 = arith.constant 2 : index
    %c0_33 = arith.constant 0 : index
    %c0_34 = arith.constant 0 : index
    %c0_35 = arith.constant 0 : index
    %30 = vector.load %arg4[%c0_31, %c2_32, %c0_33, %c0_34, %c0_35] : memref<1x4x2x8x128xf32, #tpu.memory_space<vmem>>, vector<1x1x2x8x128xf32>
    %31 = vector.shape_cast %30 : vector<1x1x2x8x128xf32> to vector<2x8x128xf32>
    %32 = vector.shape_cast %29 : vector<2x8x128xf32> to vector<1x1x2x8x128xf32>
    tpu.vector_store %arg4[%c0_31, %c2_32, %c0_33, %c0_34, %c0_35], %32 {strides = array<i32>} : memref<1x4x2x8x128xf32, #tpu.memory_space<vmem>>, vector<1x1x2x8x128xf32>,
    %c0_36 = arith.constant 0 : index
    %c3 = arith.constant 3 : index
    %c0_37 = arith.constant 0 : index
    %c0_38 = arith.constant 0 : index
    %c0_39 = arith.constant 0 : index
    %33 = vector.load %arg4[%c0_36, %c3, %c0_37, %c0_38, %c0_39] : memref<1x4x2x8x128xf32, #tpu.memory_space<vmem>>, vector<1x1x2x8x128xf32>
    %34 = vector.shape_cast %33 : vector<1x1x2x8x128xf32> to vector<2x8x128xf32>
    %35 = arith.mulf %4, %4 : vector<2x8x128xf32>
    %36 = vector.shape_cast %35 : vector<2x8x128xf32> to vector<2x1x8x128xf32>
    %cst_40 = arith.constant dense<0.000000e+00> : vector<2x8x128xf32>
    %37 = vector.multi_reduction <add>, %36, %cst_40 [1] : vector<2x1x8x128xf32> to vector<2x8x128xf32>
    %38 = arith.addf %34, %37 : vector<2x8x128xf32>
    %c0_41 = arith.constant 0 : index
    %c3_42 = arith.constant 3 : index
    %c0_43 = arith.constant 0 : index
    %c0_44 = arith.constant 0 : index
    %c0_45 = arith.constant 0 : index
    %39 = vector.load %arg4[%c0_41, %c3_42, %c0_43, %c0_44, %c0_45] : memref<1x4x2x8x128xf32, #tpu.memory_space<vmem>>, vector<1x1x2x8x128xf32>
    %40 = vector.shape_cast %39 : vector<1x1x2x8x128xf32> to vector<2x8x128xf32>
    %41 = vector.shape_cast %38 : vector<2x8x128xf32> to vector<1x1x2x8x128xf32>
    tpu.vector_store %arg4[%c0_41, %c3_42, %c0_43, %c0_44, %c0_45], %41 {strides = array<i32>} : memref<1x4x2x8x128xf32, #tpu.memory_space<vmem>>, vector<1x1x2x8x128xf32>,
    return
  }
  func.func @transform_0(%arg0: i32, %arg1: i32) -> (i32, i32, i32) {
    %c1_i32 = arith.constant 1 : i32
    %0 = arith.muli %arg0, %c1_i32 : i32
    %1 = arith.addi %0, %arg1 : i32
    %c0_i32 = arith.constant 0 : i32
    %2 = arith.minsi %1, %c0_i32 : i32
    %c0_i32_0 = arith.constant 0 : i32
    %c0_i32_1 = arith.constant 0 : i32
    %c0_i32_2 = arith.constant 0 : i32
    return %c0_i32_0, %2, %c0_i32_1 : i32, i32, i32
  }
  func.func @transform_1(%arg0: i32, %arg1: i32) -> (i32, i32, i32) {
    %c1_i32 = arith.constant 1 : i32
    %0 = arith.muli %arg0, %c1_i32 : i32
    %1 = arith.addi %0, %arg1 : i32
    %c0_i32 = arith.constant 0 : i32
    %2 = arith.minsi %1, %c0_i32 : i32
    %c0_i32_0 = arith.constant 0 : i32
    %c0_i32_1 = arith.constant 0 : i32
    %c0_i32_2 = arith.constant 0 : i32
    return %c0_i32_0, %2, %c0_i32_1 : i32, i32, i32
  }
  func.func @transform_2(%arg0: i32, %arg1: i32) -> (i32, i32, i32, i32, i32) {
    %c0_i32 = arith.constant 0 : i32
    %c0_i32_0 = arith.constant 0 : i32
    %c0_i32_1 = arith.constant 0 : i32
    %c0_i32_2 = arith.constant 0 : i32
    %c0_i32_3 = arith.constant 0 : i32
    return %arg0, %c0_i32, %c0_i32_0, %c0_i32_1, %c0_i32_2 : i32, i32, i32, i32, i32
  }
}

</mosaic_0001>

<llo_original>
// kernel: tpu_custom_call.1
$region0: #{tpu_custom_call.1}
  #allocation0 [shape = 'u32[]', space=smem, size = 0x4, offset = 0x4, fixed_abs, tag = 'smem constant byte address 0x4 - core index']
  #allocation1 [shape = 'u32[144,128]{1,0:T(1,128)}', space=vmem, size = 0x12000, scoped, tag = 'internal scratch']
  %s0 = inlined_call_operand.hbm [shape: f32[2,8,128], index: 0, kind: input, shape index: {}]
  %s1 = inlined_call_operand.hbm [shape: f32[2,8,128], index: 1, kind: input, shape index: {}]
  %s2 = inlined_call_operand.hbm [shape: f32[1,4,2,8,128], index: 2, kind: output, shape index: {}]
  %s3 = sld [smem:[#allocation0]]
  $region30: #{tpu_custom_call.1} parent=0
    _
  %s5 = ssub.s32 1, %s3
  %s6 = scalar_select 0, %s5, %s3
  $region1: #{tpu_custom_call.1} parent=0
    #allocation2 [shape = 'u8[8192]{0}', space=vmem, size = 0x2000, scoped, tag = 'input window, operand 0, single buffered']
    #allocation3 [shape = 's32[1]{0}', space=sflag, size = 0x4, scoped, tag = 'scoped memory for tpu_custom_call.1']
    #allocation4 [shape = 's32[1]{0}', space=sflag, size = 0x4, scoped, tag = 'scoped memory for tpu_custom_call.1']
    #allocation5 [shape = 'u8[8192]{0}', space=vmem, size = 0x2000, scoped, tag = 'input window, operand 1, single buffered']
    #allocation6 [shape = 's32[1]{0}', space=sflag, size = 0x4, scoped, tag = 'scoped memory for tpu_custom_call.1']
    #allocation7 [shape = 'u8[32768]{0}', space=vmem, size = 0x8000, scoped, tag = 'output window, operand 0, single buffered']
    %7 = vsyncpa [#allocation3], 0
    %8 = vsyncpa [#allocation6], 0
    %9 = vsyncpa [#allocation4], 0
    // Predicated region
    $region2: #{tpu_custom_call.1} parent=1 // pred_check
      _
    $region3: #{tpu_custom_call.1} parent=1 // pred_check_branch
      %11 = sbr.rel (0) target = $region5
    $region4: #{tpu_custom_call.1} parent=1 // pred_region
      %s12 = sadd.s32 0, 0
      %p13 = scmp.lt.s32.totalorder %s12, 0
      %s14 = scalar_select %p13, %s12, 0
      %s16 = ssub.s32 256, 256
      %17 = vsyncadd [#allocation3], %s16
      %s18 = smul.addr %s14, 128
      %s19 = scalar_lea.hbm %s0, %s18
      %s20 = sshll.u32 [#allocation2], 4
      %s21 = int_to_ptr.vmem [resolvable:$true] %s20
      %26 = dma.hbm_to_vmem [thread:$0]  %s19, 256, %s21, [#allocation3], 128, 128, 8
    $region5: #{tpu_custom_call.1} parent=1 // pred_fallthru
      _
    // Predicated region
    $region6: #{tpu_custom_call.1} parent=1 // pred_check
      _
    $region7: #{tpu_custom_call.1} parent=1 // pred_check_branch
      %28 = sbr.rel (0) target = $region9
    $region8: #{tpu_custom_call.1} parent=1 // pred_region
      %s29 = sadd.s32 0, 0
      %p30 = scmp.lt.s32.totalorder %s29, 0
      %s31 = scalar_select %p30, %s29, 0
      %s33 = ssub.s32 256, 256
      %34 = vsyncadd [#allocation6], %s33
      %s35 = smul.addr %s31, 128
      %s36 = scalar_lea.hbm %s1, %s35
      %s37 = sshll.u32 [#allocation5], 4
      %s38 = int_to_ptr.vmem [resolvable:$true] %s37
      %43 = dma.hbm_to_vmem [thread:$0]  %s36, 256, %s38, [#allocation6], 128, 128, 8
    $region9: #{tpu_custom_call.1} parent=1 // pred_fallthru
      _
    // Predicated region
    $region10: #{tpu_custom_call.1} parent=1 // pred_check
      _
    $region11: #{tpu_custom_call.1} parent=1 // pred_check_branch
      %45 = sbr.rel (0) target = $region13
    $region12: #{tpu_custom_call.1} parent=1 // pred_region
      %46 = dma.done [#allocation3], 256
    $region13: #{tpu_custom_call.1} parent=1 // pred_fallthru
      _
    // Predicated region
    $region14: #{tpu_custom_call.1} parent=1 // pred_check
      _
    $region15: #{tpu_custom_call.1} parent=1 // pred_check_branch
      %48 = sbr.rel (0) target = $region17
    $region16: #{tpu_custom_call.1} parent=1 // pred_region
      %49 = dma.done [#allocation6], 256
    $region17: #{tpu_custom_call.1} parent=1 // pred_fallthru
      _
    %s50 = sadd.s32 0, 0
    %p51 = scmp.lt.s32.totalorder %s50, 0
    %s52 = scalar_select %p51, %s50, 0
    %s53 = sadd.s32 0, 0
    %p54 = scmp.lt.s32.totalorder %s53, 0
    %s55 = scalar_select %p54, %s53, 0
    %p56 = scmp.eq.s32.totalorder 0, 0
    // Predicated region
    $region18: #{tpu_custom_call.1} parent=1 // pred_check
      %p57 = pneg %p56
    $region19: #{tpu_custom_call.1} parent=1 // pred_check_branch
      %59 = sbr.rel (%p57) target = $region21
    $region20: #{tpu_custom_call.1} parent=1 // pred_region
      %60 = vst [vmem:[#allocation7] sm:$0xff] 0.0
      %61 = vst [vmem:[#allocation7 + $0x8] sm:$0xff] 0.0
      %62 = vst [vmem:[#allocation7 + $0x10] sm:$0xff] 0.0
      %63 = vst [vmem:[#allocation7 + $0x18] sm:$0xff] 0.0
      %64 = vst [vmem:[#allocation7 + $0x20] sm:$0xff] 0.0
      %65 = vst [vmem:[#allocation7 + $0x28] sm:$0xff] 0.0
      %66 = vst [vmem:[#allocation7 + $0x30] sm:$0xff] 0.0
      %67 = vst [vmem:[#allocation7 + $0x38] sm:$0xff] 0.0
    $region21: #{tpu_custom_call.1} parent=1 // pred_fallthru
      _
    %v68 = vld [vmem:[#allocation2] sm:$0xff]
    %v69 = vld [vmem:[#allocation2 + $0x8] sm:$0xff]
    %v70 = vld [vmem:[#allocation5] sm:$0xff]
    %v71 = vld [vmem:[#allocation5 + $0x8] sm:$0xff]
    %v72 = vld [vmem:[#allocation7] sm:$0xff]
    %v73 = vld [vmem:[#allocation7 + $0x8] sm:$0xff]
    %v74 = vsub.f32 %v68, %v70
    %v75 = vsub.f32 %v69, %v71
    %v76 = vand.u32 2147483647, %v74
    %v77 = vand.u32 2147483647, %v75
    %v78 = vadd.f32 %v76, 0.0
    %v79 = vadd.f32 %v77, 0.0
    %v80 = vadd.f32 %v72, %v78
    %v81 = vadd.f32 %v73, %v79
    %82 = vst [vmem:[#allocation7] sm:$0xff] %v80
    %83 = vst [vmem:[#allocation7 + $0x8] sm:$0xff] %v81
    %s84 = scalar_lea.vmem [#allocation7], 16
    %v85 = vld [vmem:[%s84] sm:$0xff]
    %v86 = vld [vmem:[%s84 + $0x8] sm:$0xff]
    %v87 = vmul.f32 %v68, %v70
    %v88 = vmul.f32 %v69, %v71
    %v89 = vadd.f32 %v87, 0.0
    %v90 = vadd.f32 %v88, 0.0
    %v91 = vadd.f32 %v85, %v89
    %v92 = vadd.f32 %v86, %v90
    %93 = vst [vmem:[%s84] sm:$0xff] %v91
    %94 = vst [vmem:[%s84 + $0x8] sm:$0xff] %v92
    %s95 = scalar_lea.vmem [#allocation7], 32
    %v96 = vld [vmem:[%s95] sm:$0xff]
    %v97 = vld [vmem:[%s95 + $0x8] sm:$0xff]
    %v98 = vmul.f32 %v68, %v68
    %v99 = vmul.f32 %v69, %v69
    %v100 = vadd.f32 %v98, 0.0
    %v101 = vadd.f32 %v99, 0.0
    %v102 = vadd.f32 %v96, %v100
    %v103 = vadd.f32 %v97, %v101
    %104 = vst [vmem:[%s95] sm:$0xff] %v102
    %105 = vst [vmem:[%s95 + $0x8] sm:$0xff] %v103
    %s106 = scalar_lea.vmem [#allocation7], 48
    %v107 = vld [vmem:[%s106] sm:$0xff]
    %v108 = vld [vmem:[%s106 + $0x8] sm:$0xff]
    %v109 = vmul.f32 %v70, %v70
    %v110 = vmul.f32 %v71, %v71
    %v111 = vadd.f32 %v109, 0.0
    %v112 = vadd.f32 %v110, 0.0
    %v113 = vadd.f32 %v107, %v111
    %v114 = vadd.f32 %v108, %v112
    %115 = vst [vmem:[%s106] sm:$0xff] %v113
    %116 = vst [vmem:[%s106 + $0x8] sm:$0xff] %v114
    // Predicated region
    $region22: #{tpu_custom_call.1} parent=1 // pred_check
      _
    $region23: #{tpu_custom_call.1} parent=1 // pred_check_branch
      %118 = sbr.rel (0) target = $region25
    $region24: #{tpu_custom_call.1} parent=1 // pred_region
      %s120 = ssub.s32 1024, 1024
      %121 = vsyncadd [#allocation4], %s120
      %s122 = sshll.u32 [#allocation7], 4
      %s123 = int_to_ptr.vmem [resolvable:$true] %s122
      %128 = dma.vmem_to_hbm [thread:$0]  %s123, 1024, %s2, [#allocation4], 128, 128, 8
    $region25: #{tpu_custom_call.1} parent=1 // pred_fallthru
      _
    // Predicated region
    $region26: #{tpu_custom_call.1} parent=1 // pred_check
      _
    $region27: #{tpu_custom_call.1} parent=1 // pred_check_branch
      %130 = sbr.rel (0) target = $region29
    $region28: #{tpu_custom_call.1} parent=1 // pred_region
      %131 = dma.done [#allocation4], 1024
    $region29: #{tpu_custom_call.1} parent=1 // pred_fallthru
      _
    %132 = vsyncpa [#allocation3], 1
    %133 = vsyncpa [#allocation6], 1
    %134 = vsyncpa [#allocation4], 1

</llo_original>
